<compile_context>
chip_gen: v5e
topology: v5e:2x2
jax: 0.10.0
libtpu: 0.0.40
codegen_flags: <defaults>
</compile_context>

<pallas_src>
import numpy as np
import jax
import jax.numpy as jnp
from jax.experimental import pallas as pl
from jax.experimental.pallas import tpu as pltpu


# ----------------------------------------------------------------------------
# Fused kernel: 1x1-conv head -> channel max-subtract -> channel softmax
#               -> per-pixel softmax mass, scaled by upsample replication count
# ----------------------------------------------------------------------------
def fused_testnet_kernel(w_ref, b_ref, x_ref, wgt_ref, o_ref):
    # w_ref: (Cout, Cin)   b_ref: (Cout, 1)
    # x_ref: (Cin, B*S)    wgt_ref/o_ref: (1, B*S)   (lanes = flattened pixels)
    # 1x1 conv == channel matmul (synthetic t2net saliency head).
    y = jnp.dot(w_ref[...], x_ref[...],
                preferred_element_type=jnp.float32) + b_ref[...]      # (Cout, B*S)

    # test = tsal - max(tsal, dim=1)
    t = y - jnp.max(y, axis=0, keepdims=True)

    # softmax over channels (channel max is already 0 after subtraction).
    e = jnp.exp(t)                                                    # EUP
    denom = jnp.sum(e, axis=0, keepdims=True)                         # (1, B*S)
    # sum_c softmax(t)_c == (sum_c e_c) / denom  -> divide the (1,P) row only.
    per_pixel = jnp.sum(e, axis=0, keepdims=True) / denom             # (1, B*S)

    # Weight each source pixel by how many 176x176 output pixels replicate it
    # under nearest interpolation (121 for a 16x16 input).
    o_ref[...] = per_pixel * wgt_ref[...]


def _replication_weights(in_h, in_w, out_h, out_w, batch):
    """Per-source-pixel replication counts of PyTorch 'nearest' interpolation
    (src = floor(dst * in / out)), tiled batch-major to shape (1, B*in_h*in_w)."""
    idx_h = (np.arange(out_h) * in_h) // out_h
    idx_w = (np.arange(out_w) * in_w) // out_w
    cnt_h = np.bincount(idx_h, minlength=in_h).astype(np.float32)
    cnt_w = np.bincount(idx_w, minlength=in_w).astype(np.float32)
    w2d = cnt_h[:, None] * cnt_w[None, :]                 # (in_h, in_w)
    return np.tile(w2d.reshape(-1), batch)[None, :]       # (1, B*S)


# ----------------------------------------------------------------------------
# Full TestNet.forward equivalent
# ----------------------------------------------------------------------------
def testnet_forward(x, w, b, out_size=(176, 176)):
    # x: (B, Cin, H, W) NCHW
    B, Cin, H, W = x.shape
    Cout = w.shape[0]
    S = H * W

    # Collapse batch into the lane dimension: (Cin, B*S).  Everything fits in
    # VMEM (~20 KiB), so no grid / pipelining is needed — one kernel invocation.
    x2d = jnp.transpose(x.reshape(B, Cin, S), (1, 0, 2)).reshape(Cin, B * S)
    wgt = jnp.asarray(_replication_weights(H, W, out_size[0], out_size[1], B))

    vmem = pl.BlockSpec(memory_space=pltpu.MemorySpace.VMEM)
    per_pixel = pl.pallas_call(
        fused_testnet_kernel,
        out_shape=jax.ShapeDtypeStruct((1, B * S), jnp.float32),
        in_specs=[vmem, vmem, vmem, vmem],
        out_specs=vmem,
    )(w, b, x2d, wgt)

    # Tiny lane-dense partial reduction finished in plain JAX.
    return jnp.sum(per_pixel)


if __name__ == "__main__":
    # TODO(synk): `t2net` is an external, undefined backbone in the source file;
    # it is replaced by a deterministic synthetic 1x1-conv saliency head.
    key = jax.random.PRNGKey(0)
    B, Cin, Hs, Ws = 2, 8, 16, 16
    Csal = 8
    kx, kw, kb = jax.random.split(key, 3)
    x = jax.random.normal(kx, (B, Cin, Hs, Ws), dtype=jnp.float32)
    w = 0.1 * jax.random.normal(kw, (Csal, Cin), dtype=jnp.float32)
    b = 0.1 * jax.random.normal(kb, (Csal, 1), dtype=jnp.float32)

    sm = testnet_forward(x, w, b)
    sm = jax.block_until_ready(sm)

    # Pure-JAX reference of the ORIGINAL forward (materializing the 176x176
    # nearest upsample) for correctness.
    tsal_ref = jnp.einsum("oc,bchw->bohw", w, x) + b.reshape(1, Csal, 1, 1)
    idx_h = (jnp.arange(176) * Hs // 176).astype(jnp.int32)
    idx_w = (jnp.arange(176) * Ws // 176).astype(jnp.int32)
    t_ref = tsal_ref[:, :, idx_h, :][:, :, :, idx_w]
    t_ref = t_ref - jnp.max(t_ref, axis=1, keepdims=True)
    ref = jnp.sum(jax.nn.softmax(t_ref, axis=1))

    assert jnp.allclose(sm, ref, rtol=1e-4, atol=1e-1), (float(sm), float(ref))
    print("KERNEL_OK")
</pallas_src>

<mosaic_0001>
module attributes {stable_mosaic.version = 11 : i64} {
  func.func @fused_testnet_kernel(%arg0: memref<8x8xf32, #tpu.memory_space<vmem>>, %arg1: memref<8x1xf32, #tpu.memory_space<vmem>>, %arg2: memref<8x512xf32, #tpu.memory_space<vmem>>, %arg3: memref<1x512xf32, #tpu.memory_space<vmem>>, %arg4: memref<1x512xf32, #tpu.memory_space<vmem>>) attributes {dimension_semantics = [], scalar_prefetch = 0 : i64, scratch_operands = 0 : i64, tpu.core_type = #tpu.core_type<tc>} {
    %c0 = arith.constant 0 : index
    %c0_0 = arith.constant 0 : index
    %0 = vector.load %arg0[%c0, %c0_0] : memref<8x8xf32, #tpu.memory_space<vmem>>, vector<8x8xf32>
    %c0_1 = arith.constant 0 : index
    %c0_2 = arith.constant 0 : index
    %1 = vector.load %arg2[%c0_1, %c0_2] : memref<8x512xf32, #tpu.memory_space<vmem>>, vector<8x512xf32>
    %cst = arith.constant dense<0.000000e+00> : vector<8x512xf32>
    %2 = tpu.matmul %0, %1, %cst {dimension_numbers = #tpu.dot_dimension_numbers<[1], [0], [0], [1], [0, 0, 1, 1], [], []>} : vector<8x8xf32>, vector<8x512xf32>, vector<8x512xf32> -> vector<8x512xf32>
    %c0_3 = arith.constant 0 : index
    %c0_4 = arith.constant 0 : index
    %3 = vector.load %arg1[%c0_3, %c0_4] : memref<8x1xf32, #tpu.memory_space<vmem>>, vector<8x1xf32>
    %4 = vector.broadcast %3 : vector<8x1xf32> to vector<8x512xf32>
    %5 = arith.addf %2, %4 : vector<8x512xf32>
    %cst_5 = arith.constant dense<0xFF800000> : vector<512xf32>
    %6 = vector.multi_reduction <maximumf>, %5, %cst_5 [0] : vector<8x512xf32> to vector<512xf32>
    %7 = vector.shape_cast %6 : vector<512xf32> to vector<1x512xf32>
    %8 = vector.broadcast %7 : vector<1x512xf32> to vector<8x512xf32>
    %9 = arith.subf %5, %8 : vector<8x512xf32>
    %10 = math.exp %9 : vector<8x512xf32>
    %cst_6 = arith.constant dense<0.000000e+00> : vector<512xf32>
    %11 = vector.multi_reduction <add>, %10, %cst_6 [0] : vector<8x512xf32> to vector<512xf32>
    %12 = vector.shape_cast %11 : vector<512xf32> to vector<1x512xf32>
    %cst_7 = arith.constant dense<0.000000e+00> : vector<512xf32>
    %13 = vector.multi_reduction <add>, %10, %cst_7 [0] : vector<8x512xf32> to vector<512xf32>
    %14 = vector.shape_cast %13 : vector<512xf32> to vector<1x512xf32>
    %15 = arith.divf %14, %12 : vector<1x512xf32>
    %c0_8 = arith.constant 0 : index
    %c0_9 = arith.constant 0 : index
    %16 = vector.load %arg3[%c0_8, %c0_9] : memref<1x512xf32, #tpu.memory_space<vmem>>, vector<1x512xf32>
    %17 = arith.mulf %15, %16 : vector<1x512xf32>
    %c0_10 = arith.constant 0 : index
    %c0_11 = arith.constant 0 : index
    %18 = vector.load %arg4[%c0_10, %c0_11] : memref<1x512xf32, #tpu.memory_space<vmem>>, vector<1x512xf32>
    tpu.vector_store %arg4[%c0_10, %c0_11], %17 {strides = array<i32>} : memref<1x512xf32, #tpu.memory_space<vmem>>, vector<1x512xf32>,
    return
  }
}

</mosaic_0001>

<llo_original>
// kernel: tpu_custom_call.1
$region0: #{tpu_custom_call.1}
  #allocation0 [shape = 'u32[]', space=smem, size = 0x4, offset = 0x4, fixed_abs, tag = 'smem constant byte address 0x4 - core index']
  #allocation1 [shape = 'u32[72,128]{1,0:T(1,128)}', space=vmem, size = 0x9000, scoped, tag = 'internal scratch']
  %s0 = inlined_call_operand.vmem [shape: f32[8,8], index: 0, kind: input, shape index: {}]
  %s1 = inlined_call_operand.vmem [shape: f32[8,1], index: 1, kind: input, shape index: {}]
  %s2 = inlined_call_operand.hbm [shape: f32[8,512], index: 2, kind: input, shape index: {}]
  %s3 = inlined_call_operand.hbm [shape: f32[1,512], index: 3, kind: input, shape index: {}]
  %s4 = inlined_call_operand.hbm [shape: f32[1,512], index: 4, kind: output, shape index: {}]
  %s5 = sld [smem:[#allocation0]]
  $region34: #{tpu_custom_call.1} parent=0
    _
  %s7 = ssub.s32 1, %s5
  %s8 = scalar_select 0, %s7, %s5
  $region1: #{tpu_custom_call.1} parent=0
    #allocation2 [shape = 'u8[16384]{0}', space=vmem, size = 0x4000, scoped, tag = 'input window, operand 2, single buffered']
    #allocation3 [shape = 's32[1]{0}', space=sflag, size = 0x4, scoped, tag = 'scoped memory for tpu_custom_call.1']
    #allocation4 [shape = 's32[1]{0}', space=sflag, size = 0x4, scoped, tag = 'scoped memory for tpu_custom_call.1']
    #allocation5 [shape = 'u8[2048]{0}', space=vmem, size = 0x800, scoped, tag = 'input window, operand 3, single buffered']
    #allocation6 [shape = 's32[1]{0}', space=sflag, size = 0x4, scoped, tag = 'scoped memory for tpu_custom_call.1']
    #allocation7 [shape = 'u8[2048]{0}', space=vmem, size = 0x800, scoped, tag = 'output window, operand 0, single buffered']
    %9 = vsyncpa [#allocation3], 0
    %10 = vsyncpa [#allocation6], 0
    %11 = vsyncpa [#allocation4], 0
    // Predicated region
    $region2: #{tpu_custom_call.1} parent=1 // pred_check
      _
    $region3: #{tpu_custom_call.1} parent=1 // pred_check_branch
      %13 = sbr.rel (0) target = $region5
    $region4: #{tpu_custom_call.1} parent=1 // pred_region
      _
    $region5: #{tpu_custom_call.1} parent=1 // pred_fallthru
      _
    // Predicated region
    $region6: #{tpu_custom_call.1} parent=1 // pred_check
      _
    $region7: #{tpu_custom_call.1} parent=1 // pred_check_branch
      %15 = sbr.rel (0) target = $region9
    $region8: #{tpu_custom_call.1} parent=1 // pred_region
      _
    $region9: #{tpu_custom_call.1} parent=1 // pred_fallthru
      _
    // Predicated region
    $region10: #{tpu_custom_call.1} parent=1 // pred_check
      _
    $region11: #{tpu_custom_call.1} parent=1 // pred_check_branch
      %17 = sbr.rel (0) target = $region13
    $region12: #{tpu_custom_call.1} parent=1 // pred_region
      %19 = vsyncadd [#allocation3], 0
      %s21 = sshll.u32 %s2, 4
      %s22 = int_to_ptr.hbm [resolvable:$true] %s21
      %s23 = sshll.u32 [#allocation2], 4
      %s24 = int_to_ptr.vmem [resolvable:$true] %s23
      %26 = dma.hbm_to_vmem [thread:$0]  %s22, 512, %s24, [#allocation3]
    $region13: #{tpu_custom_call.1} parent=1 // pred_fallthru
      _
    // Predicated region
    $region14: #{tpu_custom_call.1} parent=1 // pred_check
      _
    $region15: #{tpu_custom_call.1} parent=1 // pred_check_branch
      %28 = sbr.rel (0) target = $region17
    $region16: #{tpu_custom_call.1} parent=1 // pred_region
      %30 = vsyncadd [#allocation6], 0
      %s32 = sshll.u32 %s3, 4
      %s33 = int_to_ptr.hbm [resolvable:$true] %s32
      %s34 = sshll.u32 [#allocation5], 4
      %s35 = int_to_ptr.vmem [resolvable:$true] %s34
      %37 = dma.hbm_to_vmem [thread:$0]  %s33, 64, %s35, [#allocation6]
    $region17: #{tpu_custom_call.1} parent=1 // pred_fallthru
      _
    // Predicated region
    $region18: #{tpu_custom_call.1} parent=1 // pred_check
      _
    $region19: #{tpu_custom_call.1} parent=1 // pred_check_branch
      %39 = sbr.rel (0) target = $region21
    $region20: #{tpu_custom_call.1} parent=1 // pred_region
      %41 = dma.done [#allocation3], 512
    $region21: #{tpu_custom_call.1} parent=1 // pred_fallthru
      _
    // Predicated region
    $region22: #{tpu_custom_call.1} parent=1 // pred_check
      _
    $region23: #{tpu_custom_call.1} parent=1 // pred_check_branch
      %43 = sbr.rel (0) target = $region25
    $region24: #{tpu_custom_call.1} parent=1 // pred_region
      %45 = dma.done [#allocation6], 64
    $region25: #{tpu_custom_call.1} parent=1 // pred_fallthru
      _
    %v46 = vld [vmem:[%s0] sm:$0xff]
    %v47 = vld [vmem:[#allocation2] sm:$0xff]
    %v48 = vld [vmem:[#allocation2 + $0x8] sm:$0xff]
    %v49 = vld [vmem:[#allocation2 + $0x10] sm:$0xff]
    %v50 = vld [vmem:[#allocation2 + $0x18] sm:$0xff]
    %v51 = vld [vmem:[%s1] sm:$0xff]
    %53 = vset.pattern.permute.xlu0 0
    %54 = vperm.xlu0 %53, %v51
    %v55 = vpop.permute.xlu0 %54
    %vm57 = vcmask 64512
    %v59 = vsel %vm57, %v46, 0
    %61 = vmatpush.msra.mxu0 0.0
    %62 = vmatpush.msra.mxu0 0.0
    %63 = vmatpush.msra.mxu0 0.0
    %64 = vmatpush.msra.mxu0 0.0
    %65 = vmatpush.msra.mxu0 0.0
    %66 = vmatpush.msra.mxu0 0.0
    %67 = vmatpush.msra.mxu0 0.0
    %68 = vmatpush.msra.mxu0 0.0
    %69 = vmatpush.msra.mxu0 0.0
    %70 = vmatpush.msra.mxu0 0.0
    %71 = vmatpush.msra.mxu0 0.0
    %72 = vmatpush.msra.mxu0 0.0
    %73 = vmatpush.msra.mxu0 0.0
    %74 = vmatpush.msra.mxu0 0.0
    %75 = vmatpush.msra.mxu0 0.0
    %76 = vmatpush.msra.mxu0 %v47
    %77 = vmatmul.f32.gmra.mxu0 %v59
    %v78 = vpop.f32.mrf.mxu0
    %v79 = vadd.f32 %v55, %v78
    %80 = vdwg.mxu0
    %81 = vmatpush.msra.mxu0 0.0
    %82 = vmatpush.msra.mxu0 0.0
    %83 = vmatpush.msra.mxu0 0.0
    %84 = vmatpush.msra.mxu0 0.0
    %85 = vmatpush.msra.mxu0 0.0
    %86 = vmatpush.msra.mxu0 0.0
    %87 = vmatpush.msra.mxu0 0.0
    %88 = vmatpush.msra.mxu0 0.0
    %89 = vmatpush.msra.mxu0 0.0
    %90 = vmatpush.msra.mxu0 0.0
    %91 = vmatpush.msra.mxu0 0.0
    %92 = vmatpush.msra.mxu0 0.0
    %93 = vmatpush.msra.mxu0 0.0
    %94 = vmatpush.msra.mxu0 0.0
    %95 = vmatpush.msra.mxu0 0.0
    %96 = vmatpush.msra.mxu0 %v48
    %97 = vmatmul.f32.gmra.mxu0 %v59
    %v98 = vpop.f32.mrf.mxu0
    %v99 = vadd.f32 %v55, %v98
    %100 = vdwg.mxu0
    %101 = vmatpush.msra.mxu0 0.0
    %102 = vmatpush.msra.mxu0 0.0
    %103 = vmatpush.msra.mxu0 0.0
    %104 = vmatpush.msra.mxu0 0.0
    %105 = vmatpush.msra.mxu0 0.0
    %106 = vmatpush.msra.mxu0 0.0
    %107 = vmatpush.msra.mxu0 0.0
    %108 = vmatpush.msra.mxu0 0.0
    %109 = vmatpush.msra.mxu0 0.0
    %110 = vmatpush.msra.mxu0 0.0
    %111 = vmatpush.msra.mxu0 0.0
    %112 = vmatpush.msra.mxu0 0.0
    %113 = vmatpush.msra.mxu0 0.0
    %114 = vmatpush.msra.mxu0 0.0
    %115 = vmatpush.msra.mxu0 0.0
    %116 = vmatpush.msra.mxu0 %v49
    %117 = vmatmul.f32.gmra.mxu0 %v59
    %v118 = vpop.f32.mrf.mxu0
    %v119 = vadd.f32 %v55, %v118
    %120 = vdwg.mxu0
    %121 = vmatpush.msra.mxu0 0.0
    %122 = vmatpush.msra.mxu0 0.0
    %123 = vmatpush.msra.mxu0 0.0
    %124 = vmatpush.msra.mxu0 0.0
    %125 = vmatpush.msra.mxu0 0.0
    %126 = vmatpush.msra.mxu0 0.0
    %127 = vmatpush.msra.mxu0 0.0
    %128 = vmatpush.msra.mxu0 0.0
    %129 = vmatpush.msra.mxu0 0.0
    %130 = vmatpush.msra.mxu0 0.0
    %131 = vmatpush.msra.mxu0 0.0
    %132 = vmatpush.msra.mxu0 0.0
    %133 = vmatpush.msra.mxu0 0.0
    %134 = vmatpush.msra.mxu0 0.0
    %135 = vmatpush.msra.mxu0 0.0
    %136 = vmatpush.msra.mxu0 %v50
    %137 = vmatmul.f32.gmra.mxu0 %v59
    %v138 = vpop.f32.mrf.mxu0
    %v139 = vadd.f32 %v55, %v138
    %140 = vdwg.mxu0
    %v141 = vrot.slane %v79, 4
    %v142 = vmax.f32 %v79, %v141
    %v143 = vrot.slane %v142, 2
    %v144 = vmax.f32 %v142, %v143
    %v145 = vrot.slane %v144, 1
    %v146 = vmax.f32 %v144, %v145
    %v147 = vrot.slane %v99, 4
    %v148 = vmax.f32 %v99, %v147
    %v149 = vrot.slane %v148, 2
    %v150 = vmax.f32 %v148, %v149
    %v151 = vrot.slane %v150, 1
    %v152 = vmax.f32 %v150, %v151
    %v153 = vrot.slane %v119, 4
    %v154 = vmax.f32 %v119, %v153
    %v155 = vrot.slane %v154, 2
    %v156 = vmax.f32 %v154, %v155
    %v157 = vrot.slane %v156, 1
    %v158 = vmax.f32 %v156, %v157
    %v159 = vrot.slane %v139, 4
    %v160 = vmax.f32 %v139, %v159
    %v161 = vrot.slane %v160, 2
    %v162 = vmax.f32 %v160, %v161
    %v163 = vrot.slane %v162, 1
    %v164 = vmax.f32 %v162, %v163
    %v165 = vsub.f32 %v79, %v146
    %v166 = vsub.f32 %v99, %v152
    %v167 = vsub.f32 %v119, %v158
    %v168 = vsub.f32 %v139, %v164
    %v169 = vmul.f32 %v165, 1.442695
    %v170 = vpow.pop %v169
    %v171 = vmul.f32 %v166, 1.442695
    %v172 = vpow.pop %v171
    %v173 = vmul.f32 %v167, 1.442695
    %v174 = vpow.pop %v173
    %v175 = vmul.f32 %v168, 1.442695
    %v176 = vpow.pop %v175
    %v177 = vrot.slane %v170, 4
    %v178 = vadd.f32 %v170, %v177
    %v179 = vrot.slane %v178, 2
    %v180 = vadd.f32 %v178, %v179
    %v181 = vrot.slane %v180, 1
    %v182 = vadd.f32 %v180, %v181
    %v183 = vrot.slane %v172, 4
    %v184 = vadd.f32 %v172, %v183
    %v185 = vrot.slane %v184, 2
    %v186 = vadd.f32 %v184, %v185
    %v187 = vrot.slane %v186, 1
    %v188 = vadd.f32 %v186, %v187
    %v189 = vrot.slane %v174, 4
    %v190 = vadd.f32 %v174, %v189
    %v191 = vrot.slane %v190, 2
    %v192 = vadd.f32 %v190, %v191
    %v193 = vrot.slane %v192, 1
    %v194 = vadd.f32 %v192, %v193
    %v195 = vrot.slane %v176, 4
    %v196 = vadd.f32 %v176, %v195
    %v197 = vrot.slane %v196, 2
    %v198 = vadd.f32 %v196, %v197
    %v199 = vrot.slane %v198, 1
    %v200 = vadd.f32 %v198, %v199
    %v201 = vrcp.pop %v182
    %v202 = vmul.f32 %v182, %v201
    %v203 = vsub.f32 1.0, %v202
    %v204 = vmul.f32 %v201, %v203
    %v205 = vadd.f32 %v201, %v204
    %vm206 = vweird.f32 %v182
    %vm207 = vweird.f32 %v201
    %vm208 = vmor %vm206, %vm207
    %v209 = vsel %vm208, %v201, %v205
    %v210 = vand.u32 2147483647, %v182
    %vm211 = vcmp.eq.f32.partialorder %v210, 8.507059e+37
    %v212 = vand.u32 %v182, 2147483648
    %v213 = vor.u32 1.1754944e-38, %v212
    %v214 = vsel %vm211, %v213, %v209
    %v215 = vmul.f32 %v182, %v214
    %v216 = vrcp.pop %v188
    %v217 = vmul.f32 %v188, %v216
    %v218 = vsub.f32 1.0, %v217
    %v219 = vmul.f32 %v216, %v218
    %v220 = vadd.f32 %v216, %v219
    %vm221 = vweird.f32 %v188
    %vm222 = vweird.f32 %v216
    %vm223 = vmor %vm221, %vm222
    %v224 = vsel %vm223, %v216, %v220
    %v225 = vand.u32 2147483647, %v188
    %vm226 = vcmp.eq.f32.partialorder %v225, 8.507059e+37
    %v227 = vand.u32 %v188, 2147483648
    %v228 = vor.u32 1.1754944e-38, %v227
    %v229 = vsel %vm226, %v228, %v224
    %v230 = vmul.f32 %v188, %v229
    %v231 = vrcp.pop %v194
    %v232 = vmul.f32 %v194, %v231
    %v233 = vsub.f32 1.0, %v232
    %v234 = vmul.f32 %v231, %v233
    %v235 = vadd.f32 %v231, %v234
    %vm236 = vweird.f32 %v194
    %vm237 = vweird.f32 %v231
    %vm238 = vmor %vm236, %vm237
    %v239 = vsel %vm238, %v231, %v235
    %v240 = vand.u32 2147483647, %v194
    %vm241 = vcmp.eq.f32.partialorder %v240, 8.507059e+37
    %v242 = vand.u32 %v194, 2147483648
    %v243 = vor.u32 1.1754944e-38, %v242
    %v244 = vsel %vm241, %v243, %v239
    %v245 = vmul.f32 %v194, %v244
    %v246 = vrcp.pop %v200
    %v247 = vmul.f32 %v200, %v246
    %v248 = vsub.f32 1.0, %v247
    %v249 = vmul.f32 %v246, %v248
    %v250 = vadd.f32 %v246, %v249
    %vm251 = vweird.f32 %v200
    %vm252 = vweird.f32 %v246
    %vm253 = vmor %vm251, %vm252
    %v254 = vsel %vm253, %v246, %v250
    %v255 = vand.u32 2147483647, %v200
    %vm256 = vcmp.eq.f32.partialorder %v255, 8.507059e+37
    %v257 = vand.u32 %v200, 2147483648
    %v258 = vor.u32 1.1754944e-38, %v257
    %v259 = vsel %vm256, %v258, %v254
    %v260 = vmul.f32 %v200, %v259
    %v261 = vld [vmem:[#allocation5] sm:$0xf]
    %v263 = vperm.slane %v261, 0
    %v264 = vperm.slane %v261, 1
    %v265 = vperm.slane %v261, 2
    %v266 = vperm.slane %v261, 3
    %v271 = vmul.f32 %v215, %v263
    %v272 = vmul.f32 %v230, %v264
    %v273 = vmul.f32 %v245, %v265
    %v274 = vmul.f32 %v260, %v266
    %v279 = vrot.slane %v272, 7
    %v280 = vrot.slane %v273, 6
    %v281 = vrot.slane %v274, 5
    %vm282 = vcmask 1040384
    %v283 = vsel %vm282, %v271, %v279
    %vm284 = vcmask 1042434
    %v285 = vsel %vm284, %v280, %v281
    %vm286 = vcmask 1041408
    %v287 = vsel %vm286, %v283, %v285
    %v289 = vlaneseq
    %vm290 = vcmp.ge.s32.totalorder %v289, 0
    %vm291 = vcmp.lt.s32.totalorder %v289, 512
    %vm292 = vmand %vm290, %vm291
    %293 = vst.msk [vmem:[#allocation7] sm:$0xf] %vm292, %v287
    // Predicated region
    $region26: #{tpu_custom_call.1} parent=1 // pred_check
      _
    $region27: #{tpu_custom_call.1} parent=1 // pred_check_branch
      %295 = sbr.rel (0) target = $region29
    $region28: #{tpu_custom_call.1} parent=1 // pred_region
      %297 = vsyncadd [#allocation4], 0
      %s299 = sshll.u32 [#allocation7], 4
      %s300 = int_to_ptr.vmem [resolvable:$true] %s299
      %s301 = sshll.u32 %s4, 4
      %s302 = int_to_ptr.hbm [resolvable:$true] %s301
      %304 = dma.vmem_to_hbm [thread:$0]  %s300, 64, %s302, [#allocation4]
    $region29: #{tpu_custom_call.1} parent=1 // pred_fallthru
      _
    // Predicated region
    $region30: #{tpu_custom_call.1} parent=1 // pred_check
      _
    $region31: #{tpu_custom_call.1} parent=1 // pred_check_branch
      %306 = sbr.rel (0) target = $region33
    $region32: #{tpu_custom_call.1} parent=1 // pred_region
      %308 = dma.done [#allocation4], 64
    $region33: #{tpu_custom_call.1} parent=1 // pred_fallthru
      _
    %309 = vsyncpa [#allocation3], 1
    %310 = vsyncpa [#allocation6], 1
    %311 = vsyncpa [#allocation4], 1

</llo_original>
